<compile_context>
chip_gen: v7x
topology: tpu7x:2x2x1
jax: 0.10.0
libtpu: 0.0.40
codegen_flags: <defaults>
</compile_context>

<pallas_src>
import jax
import jax.numpy as jnp
from jax import lax
from jax.experimental import pallas as pl
from jax.experimental.pallas import tpu as pltpu


# ---------------------------------------------------------------------------
# Kernel: fused  conv1(+BN1 scale) -> +shift -> ReLU -> conv2(+BN2 scale)
#         -> +shift  for one (batch, pixel-tile) block.  Pixels on lanes.
# ---------------------------------------------------------------------------
def _conv1x1_fused_kernel(x_ref, w1_ref, t1_ref, w2_ref, t2_ref, o_ref):
    # x: (Cin, TP), w1: (Chid, Cin) [BN1 scale pre-folded], t1: (Chid, 1),
    # w2: (Cin, Chid) [BN2 scale pre-folded], t2: (Cin, 1),  o: (Cin, TP).
    x = x_ref[...]

    # conv1 (1x1) + BN1 shift + ReLU; f32 accumulation on the MXU.
    h = jnp.dot(w1_ref[...], x, preferred_element_type=jnp.float32)
    h = jnp.maximum(h + t1_ref[...], 0.0)

    # conv2 (1x1) + BN2 shift.  The downcast of the f32 accumulator to the
    # compute dtype before the second MXU pass is intentional (inference).
    y = jnp.dot(w2_ref[...], h.astype(w2_ref.dtype),
                preferred_element_type=jnp.float32)
    o_ref[...] = (y + t2_ref[...]).astype(o_ref.dtype)


# ---------------------------------------------------------------------------
# Host-side helpers
# ---------------------------------------------------------------------------
def _fold_bn(gamma, beta, mean, var, eps):
    scale = gamma.astype(jnp.float32) * lax.rsqrt(var.astype(jnp.float32) + eps)
    shift = beta.astype(jnp.float32) - mean.astype(jnp.float32) * scale
    return scale, shift


def _choose_tile_pixels(hw, cin, itemsize, target_bytes, max_tp=8192):
    """Pixels per tile: lane-dense (multiple of 128), sized by bytes."""
    if hw <= 128:
        return hw                       # whole pixel axis in one tile
    tp = int(target_bytes) // max(1, cin * itemsize)
    tp = max(128, min(tp, max_tp, hw))
    return (tp // 128) * 128


def _vmem_limit_bytes():
    """~75% of physical VMEM, capped at 96 MiB (v5e/v6e -> 96 MiB, v7x -> 48 MiB)."""
    try:
        cap = int(pltpu.get_tpu_info().vmem_capacity_bytes)
        if cap <= 0:
            raise ValueError("bad vmem capacity")
    except Exception:
        cap = 64 * 1024 * 1024          # conservative (v7x-sized) fallback
    return min(cap * 3 // 4, 96 * 1024 * 1024)


# ---------------------------------------------------------------------------
# Wrapper
# ---------------------------------------------------------------------------
def conv1x1_forward(params, x, *, eps=1e-3, compute_dtype=None,
                    tile_pixels=None, target_tile_bytes=2 << 20):
    """x: (B, Cin, H, W) NCHW -> (B, Cin, H, W).

    params["w1"]: (Chid, Cin)  == conv1.weight[:, :, 0, 0]  (PyTorch OIHW)
    params["w2"]: (Cin, Chid)  == conv2.weight[:, :, 0, 0]
    compute_dtype: dtype fed to the MXU (e.g. jnp.bfloat16 on v6e/v7x);
                   defaults to x.dtype.  Accumulation / BN math stays f32.
    """
    B, Cin, H, W = x.shape
    w1, w2 = params["w1"], params["w2"]
    Chid = w1.shape[0]
    HW = H * W

    cdt = x.dtype if compute_dtype is None else jnp.dtype(compute_dtype)

    # Fold BN scales into the conv weights (per output channel = rows here);
    # keep only the per-channel shifts as f32 epilogue adds.
    s1, t1 = _fold_bn(params["bn1_g"], params["bn1_b"],
                      params["bn1_m"], params["bn1_v"], eps)
    s2, t2 = _fold_bn(params["bn2_g"], params["bn2_b"],
                      params["bn2_m"], params["bn2_v"], eps)
    w1_eff = (w1.astype(jnp.float32) * s1[:, None]).astype(cdt)   # (Chid, Cin)
    w2_eff = (w2.astype(jnp.float32) * s2[:, None]).astype(cdt)   # (Cin, Chid)
    t1 = t1.reshape(Chid, 1)
    t2 = t2.reshape(Cin, 1)

    # View x in its native NCHW layout as (B, Cin, HW): free reshape, no
    # transpose, no pad.  Pixel tiles (multiple of 128) land on the lane dim.
    x3 = x.reshape(B, Cin, HW).astype(cdt)

    if tile_pixels is None:
        TP = _choose_tile_pixels(HW, Cin, jnp.dtype(cdt).itemsize,
                                 target_tile_bytes)
    else:
        TP = int(tile_pixels)
    n_p = pl.cdiv(HW, TP)               # partial last tile masked on store

    grid = (B, n_p)
    y3 = pl.pallas_call(
        _conv1x1_fused_kernel,
        out_shape=jax.ShapeDtypeStruct((B, Cin, HW), x.dtype),
        grid=grid,
        in_specs=[
            pl.BlockSpec((None, Cin, TP), lambda b, p: (b, 0, p)),  # x (streamed)
            pl.BlockSpec((Chid, Cin), lambda b, p: (0, 0)),         # w1*s1 (resident)
            pl.BlockSpec((Chid, 1), lambda b, p: (0, 0)),           # BN1 shift
            pl.BlockSpec((Cin, Chid), lambda b, p: (0, 0)),         # w2*s2 (resident)
            pl.BlockSpec((Cin, 1), lambda b, p: (0, 0)),            # BN2 shift
        ],
        out_specs=pl.BlockSpec((None, Cin, TP), lambda b, p: (b, 0, p)),
        compiler_params=pltpu.CompilerParams(
            dimension_semantics=("parallel", "parallel"),
            vmem_limit_bytes=_vmem_limit_bytes(),
        ),
    )(x3, w1_eff, t1, w2_eff, t2)

    return y3.reshape(B, Cin, H, W)


# ---------------------------------------------------------------------------
# Pure-JAX reference (real 1x1 convolutions + BatchNorm formula)
# ---------------------------------------------------------------------------
def reference_forward(params, x, *, eps=1e-3):
    def bn(h, g, b, m, v):
        inv = lax.rsqrt(v + eps)
        return ((h - m[None, :, None, None]) * inv[None, :, None, None]
                * g[None, :, None, None] + b[None, :, None, None])

    w1 = params["w1"][:, :, None, None]     # (Chid, Cin, 1, 1) OIHW
    w2 = params["w2"][:, :, None, None]     # (Cin, Chid, 1, 1) OIHW

    h = lax.conv_general_dilated(
        x, w1, (1, 1), "VALID", dimension_numbers=("NCHW", "OIHW", "NCHW"))
    h = bn(h, params["bn1_g"], params["bn1_b"], params["bn1_m"], params["bn1_v"])
    h = jnp.maximum(h, 0.0)
    y = lax.conv_general_dilated(
        h, w2, (1, 1), "VALID", dimension_numbers=("NCHW", "OIHW", "NCHW"))
    y = bn(y, params["bn2_g"], params["bn2_b"], params["bn2_m"], params["bn2_v"])
    return y


# ---------------------------------------------------------------------------
# Main
# ---------------------------------------------------------------------------
if __name__ == "__main__":
    B, Cin, H, W = 2, 4, 16, 16
    ratio = 4
    Chid = Cin * ratio
    EPS = 1e-3   # matches nn.BatchNorm2d(..., eps=0.001) in the source module

    key = jax.random.PRNGKey(0)
    ks = jax.random.split(key, 11)
    w_init = 0.1

    params = {
        # Conv weights in PyTorch OIHW layout with the 1x1 kernel squeezed.
        "w1": jax.random.normal(ks[0], (Chid, Cin), jnp.float32) * w_init,
        "w2": jax.random.normal(ks[1], (Cin, Chid), jnp.float32) * w_init,
        # BatchNorm1 (Chid channels): gamma, beta, running_mean, running_var
        "bn1_g": 1.0 + 0.1 * jax.random.normal(ks[2], (Chid,), jnp.float32),
        "bn1_b": 0.1 * jax.random.normal(ks[3], (Chid,), jnp.float32),
        "bn1_m": 0.1 * jax.random.normal(ks[4], (Chid,), jnp.float32),
        "bn1_v": 1.0 + 0.1 * jnp.abs(jax.random.normal(ks[5], (Chid,), jnp.float32)),
        # BatchNorm2 (Cin channels)
        "bn2_g": 1.0 + 0.1 * jax.random.normal(ks[6], (Cin,), jnp.float32),
        "bn2_b": 0.1 * jax.random.normal(ks[7], (Cin,), jnp.float32),
        "bn2_m": 0.1 * jax.random.normal(ks[8], (Cin,), jnp.float32),
        "bn2_v": 1.0 + 0.1 * jnp.abs(jax.random.normal(ks[9], (Cin,), jnp.float32)),
    }

    x = jax.random.normal(ks[10], (B, Cin, H, W), jnp.float32)
    ref = reference_forward(params, x, eps=EPS)

    # 1) f32 path, auto byte-sized tile (TP=256 here -> grid (2, 1)).
    out = jax.block_until_ready(conv1x1_forward(params, x, eps=EPS))
    assert out.shape == (B, Cin, H, W)
    err = float(jnp.max(jnp.abs(out - ref)))
    assert jnp.allclose(out, ref, atol=1e-4, rtol=1e-4), f"f32 max abs err {err}"

    # 2) f32 path with an explicit smaller pixel tile -> multi-step (2, 2) grid.
    out_t = jax.block_until_ready(
        conv1x1_forward(params, x, eps=EPS, tile_pixels=128))
    err_t = float(jnp.max(jnp.abs(out_t - ref)))
    assert jnp.allclose(out_t, ref, atol=1e-4, rtol=1e-4), f"tiled max abs err {err_t}"

    # 3) bf16-MXU path (v6e/v7x feedback): bf16 operands, f32 accumulation.
    out_bf = jax.block_until_ready(
        conv1x1_forward(params, x, eps=EPS, compute_dtype=jnp.bfloat16))
    err_bf = float(jnp.max(jnp.abs(out_bf - ref)))
    assert jnp.allclose(out_bf, ref, atol=5e-2, rtol=5e-2), f"bf16 max abs err {err_bf}"

    print("KERNEL_OK")
</pallas_src>

<mosaic_0001>
module attributes {stable_mosaic.version = 11 : i64} {
  func.func @_conv1x1_fused_kernel(%arg0: i32, %arg1: i32, %arg2: memref<1x4x256xf32, #tpu.memory_space<vmem>>, %arg3: memref<16x4xf32, #tpu.memory_space<vmem>>, %arg4: memref<16x1xf32, #tpu.memory_space<vmem>>, %arg5: memref<4x16xf32, #tpu.memory_space<vmem>>, %arg6: memref<4x1xf32, #tpu.memory_space<vmem>>, %arg7: memref<1x4x256xf32, #tpu.memory_space<vmem>>) attributes {dimension_semantics = [#tpu.dimension_semantics<parallel>, #tpu.dimension_semantics<parallel>], iteration_bounds = array<i64: 2, 1>, scalar_prefetch = 0 : i64, scratch_operands = 0 : i64, tpu.core_type = #tpu.core_type<tc>, window_params = [{transform_indices = @transform_0, window_bounds = array<i64: 1, 4, 256>}, {pipeline_mode = #tpu.pipeline_mode<synchronous>, transform_indices = @transform_1, window_bounds = array<i64: 16, 4>}, {pipeline_mode = #tpu.pipeline_mode<synchronous>, transform_indices = @transform_2, window_bounds = array<i64: 16, 1>}, {pipeline_mode = #tpu.pipeline_mode<synchronous>, transform_indices = @transform_3, window_bounds = array<i64: 4, 16>}, {pipeline_mode = #tpu.pipeline_mode<synchronous>, transform_indices = @transform_4, window_bounds = array<i64: 4, 1>}, {transform_indices = @transform_5, window_bounds = array<i64: 1, 4, 256>}]} {
    %c0 = arith.constant 0 : index
    %c0_0 = arith.constant 0 : index
    %c0_1 = arith.constant 0 : index
    %0 = vector.load %arg2[%c0, %c0_0, %c0_1] : memref<1x4x256xf32, #tpu.memory_space<vmem>>, vector<1x4x256xf32>
    %1 = vector.shape_cast %0 : vector<1x4x256xf32> to vector<4x256xf32>
    %c0_2 = arith.constant 0 : index
    %c0_3 = arith.constant 0 : index
    %2 = vector.load %arg3[%c0_2, %c0_3] : memref<16x4xf32, #tpu.memory_space<vmem>>, vector<16x4xf32>
    %cst = arith.constant dense<0.000000e+00> : vector<16x256xf32>
    %3 = tpu.matmul %2, %1, %cst {dimension_numbers = #tpu.dot_dimension_numbers<[1], [0], [0], [1], [0, 0, 1, 1], [], []>} : vector<16x4xf32>, vector<4x256xf32>, vector<16x256xf32> -> vector<16x256xf32>
    %c0_4 = arith.constant 0 : index
    %c0_5 = arith.constant 0 : index
    %4 = vector.load %arg4[%c0_4, %c0_5] : memref<16x1xf32, #tpu.memory_space<vmem>>, vector<16x1xf32>
    %5 = vector.broadcast %4 : vector<16x1xf32> to vector<16x256xf32>
    %6 = arith.addf %3, %5 : vector<16x256xf32>
    %cst_6 = arith.constant 0.000000e+00 : f32
    %7 = vector.broadcast %cst_6 : f32 to vector<16x256xf32>
    %8 = arith.maximumf %6, %7 : vector<16x256xf32>
    %c0_7 = arith.constant 0 : index
    %c0_8 = arith.constant 0 : index
    %9 = vector.load %arg5[%c0_7, %c0_8] : memref<4x16xf32, #tpu.memory_space<vmem>>, vector<4x16xf32>
    %cst_9 = arith.constant dense<0.000000e+00> : vector<4x256xf32>
    %10 = tpu.matmul %9, %8, %cst_9 {dimension_numbers = #tpu.dot_dimension_numbers<[1], [0], [0], [1], [0, 0, 1, 1], [], []>} : vector<4x16xf32>, vector<16x256xf32>, vector<4x256xf32> -> vector<4x256xf32>
    %c0_10 = arith.constant 0 : index
    %c0_11 = arith.constant 0 : index
    %11 = vector.load %arg6[%c0_10, %c0_11] : memref<4x1xf32, #tpu.memory_space<vmem>>, vector<4x1xf32>
    %12 = vector.broadcast %11 : vector<4x1xf32> to vector<4x256xf32>
    %13 = arith.addf %10, %12 : vector<4x256xf32>
    %c0_12 = arith.constant 0 : index
    %c0_13 = arith.constant 0 : index
    %c0_14 = arith.constant 0 : index
    %14 = vector.load %arg7[%c0_12, %c0_13, %c0_14] : memref<1x4x256xf32, #tpu.memory_space<vmem>>, vector<1x4x256xf32>
    %15 = vector.shape_cast %14 : vector<1x4x256xf32> to vector<4x256xf32>
    %16 = vector.shape_cast %13 : vector<4x256xf32> to vector<1x4x256xf32>
    tpu.vector_store %arg7[%c0_12, %c0_13, %c0_14], %16 {strides = array<i32>} : memref<1x4x256xf32, #tpu.memory_space<vmem>>, vector<1x4x256xf32>,
    return
  }
  func.func @transform_0(%arg0: i32, %arg1: i32) -> (i32, i32, i32) {
    %c0_i32 = arith.constant 0 : i32
    %c0_i32_0 = arith.constant 0 : i32
    return %arg0, %c0_i32, %arg1 : i32, i32, i32
  }
  func.func @transform_1(%arg0: i32, %arg1: i32) -> (i32, i32) {
    %c0_i32 = arith.constant 0 : i32
    %c0_i32_0 = arith.constant 0 : i32
    %c0_i32_1 = arith.constant 0 : i32
    return %c0_i32, %c0_i32_0 : i32, i32
  }
  func.func @transform_2(%arg0: i32, %arg1: i32) -> (i32, i32) {
    %c0_i32 = arith.constant 0 : i32
    %c0_i32_0 = arith.constant 0 : i32
    %c0_i32_1 = arith.constant 0 : i32
    return %c0_i32, %c0_i32_0 : i32, i32
  }
  func.func @transform_3(%arg0: i32, %arg1: i32) -> (i32, i32) {
    %c0_i32 = arith.constant 0 : i32
    %c0_i32_0 = arith.constant 0 : i32
    %c0_i32_1 = arith.constant 0 : i32
    return %c0_i32, %c0_i32_0 : i32, i32
  }
  func.func @transform_4(%arg0: i32, %arg1: i32) -> (i32, i32) {
    %c0_i32 = arith.constant 0 : i32
    %c0_i32_0 = arith.constant 0 : i32
    %c0_i32_1 = arith.constant 0 : i32
    return %c0_i32, %c0_i32_0 : i32, i32
  }
  func.func @transform_5(%arg0: i32, %arg1: i32) -> (i32, i32, i32) {
    %c0_i32 = arith.constant 0 : i32
    %c0_i32_0 = arith.constant 0 : i32
    return %arg0, %c0_i32, %arg1 : i32, i32, i32
  }
}

</mosaic_0001>

<llo_original>
// kernel: tpu_custom_call.1
$region0: #{tpu_custom_call.1}
  #allocation0 [shape = 'u32[]', space=smem, size = 0x4, offset = 0x4, fixed_abs, tag = 'smem constant byte address 0x4 - core index']
  #allocation1 [shape = 'u32[144,128]{1,0:T(1,128)}', space=vmem, size = 0x12000, scoped, tag = 'internal scratch']
  %s0 = inlined_call_operand.vmem [shape: f32[2,4,256], index: 0, kind: input, shape index: {}]
  %s1 = inlined_call_operand.vmem [shape: f32[16,4], index: 1, kind: input, shape index: {}]
  %s2 = inlined_call_operand.vmem [shape: f32[16,1], index: 2, kind: input, shape index: {}]
  %s3 = inlined_call_operand.vmem [shape: f32[4,16], index: 3, kind: input, shape index: {}]
  %s4 = inlined_call_operand.vmem [shape: f32[4,1], index: 4, kind: input, shape index: {}]
  %s5 = inlined_call_operand.hbm [shape: f32[2,4,256], index: 5, kind: output, shape index: {}]
  %s6 = sld [smem:[#allocation0]]
  $region53: #{tpu_custom_call.1} parent=0
    _
  %s8 = ssub.s32 1, %s6
  %s9 = scalar_select 0, %s8, %s6
  $region1: #{tpu_custom_call.1} parent=0
    #allocation2 [shape = 'u8[8192]{0}', space=vmem, size = 0x2000, scoped, tag = 'output window, operand 0']
    #allocation3 [shape = 's32[2]{0}', space=sflag, size = 0x8, scoped, tag = 'scoped memory for tpu_custom_call.1']
    %10 = vsyncpa [#allocation3], 0
    %s11 = scalar_lea.sflag [#allocation3], 1
    %12 = vsyncpa %s11, 0
    loop: start=0, step=1, limit=4
    $region2: #{tpu_custom_call.1} parent=1 // loop_pre_header
      _
    $region3: #{tpu_custom_call.1} parent=1 // loop_header
      %s14 = sphi 0, %s18
      %p15 = scmp.ge.s32.totalorder %s14, 4
      %s21 = sphi 0, %s33
      %s22 = sphi 0, %s29
      %s23 = sphi 0, %s21
      %s24 = sphi 0, %s22
      %s25 = sphi 0, %s23
      %s26 = sphi 0, %s24
      %s38 = sphi 0, %s40
      %s41 = sphi 0, %s38
      %s42 = sphi 0, %s41
      %s58 = sphi 0, %s42
      %s62 = sphi 0, %s62
      %s64 = sphi 0, %s62
      %s65 = sphi 0, %s64
      %s79 = sphi 0, %s65
      %s83 = sphi 0, %s83
      %s85 = sphi 0, %s83
      %s86 = sphi 0, %s85
      %s100 = sphi 0, %s86
      %s104 = sphi 0, %s104
      %s106 = sphi 0, %s104
      %s107 = sphi 0, %s106
      %s121 = sphi 0, %s107
      %s125 = sphi 0, %s125
      %s127 = sphi 0, %s125
      %s128 = sphi 0, %s127
      %s142 = sphi 0, %s128
      %s150 = sphi 0, %s152
      %s153 = sphi 0, %s150
      %s154 = sphi 0, %s153
      %s170 = sphi 0, %s154
    $region4: #{tpu_custom_call.1} parent=1 // loop_header_branch
      %17 = sbr.rel (%p15) target = $region8
    $region5: #{tpu_custom_call.1} parent=1 // loop_body
      %s19 = ssub.s32 %s14, 1
      %s20 = ssub.s32 %s14, 2
      %s27 = sadd.s32 1, %s22
      %p28 = scmp.ge.s32.totalorder %s27, 1
      %s29 = scalar_select %p28, 0, %s27
      %s30 = sadd.s32 1, %s21
      %s31 = scalar_select %p28, %s30, %s21
      %p32 = scmp.ge.s32.totalorder %s31, 2
      %s33 = scalar_select %p32, 0, %s31
      %s34 = ssub.s32 %s21, %s33
      %s35 = ssub.s32 %s22, %s29
      %s36 = sor.u32 %s34, %s35
      %p37 = scmp.eq.s32.totalorder %s36, 0
      %s39 = sadd.s32 %s38, 1
      %s40 = scalar_select %p37, %s38, %s39
      %p43 = pneg %p37
      %p44 = scmp.eq.s32.totalorder %s14, 1
      %p45 = por %p43, %p44
      %p46 = scmp.ne.s32.totalorder %s38, %s41
      %p47 = scmp.eq.s32.totalorder %s14, 0
      %p48 = por %p46, %p47
      %p49 = scmp.ne.s32.totalorder %s38, %s41
      %p50 = scmp.eq.s32.totalorder %s19, 1
      %p51 = por %p49, %p50
      %p52 = scmp.ne.s32.totalorder %s41, %s42
      %p53 = scmp.eq.s32.totalorder %s19, 0
      %p54 = por %p52, %p53
      %p55 = scmp.ne.s32.totalorder %s41, %s42
      %p56 = scmp.eq.s32.totalorder %s20, 1
      %p57 = por %p55, %p56
      %p59 = scmp.ne.s32.totalorder %s42, %s58
      %p60 = scmp.eq.s32.totalorder %s20, 0
      %p61 = por %p59, %p60
      %s63 = sadd.s32 %s62, 1
      %p66 = scmp.eq.s32.totalorder %s14, 1
      %p67 = scmp.ne.s32.totalorder %s62, %s64
      %p68 = scmp.eq.s32.totalorder %s14, 0
      %p69 = por %p67, %p68
      %p70 = scmp.ne.s32.totalorder %s62, %s64
      %p71 = scmp.eq.s32.totalorder %s19, 1
      %p72 = por %p70, %p71
      %p73 = scmp.ne.s32.totalorder %s64, %s65
      %p74 = scmp.eq.s32.totalorder %s19, 0
      %p75 = por %p73, %p74
      %p76 = scmp.ne.s32.totalorder %s64, %s65
      %p77 = scmp.eq.s32.totalorder %s20, 1
      %p78 = por %p76, %p77
      %p80 = scmp.ne.s32.totalorder %s65, %s79
      %p81 = scmp.eq.s32.totalorder %s20, 0
      %p82 = por %p80, %p81
      %s84 = sadd.s32 %s83, 1
      %p87 = scmp.eq.s32.totalorder %s14, 1
      %p88 = scmp.ne.s32.totalorder %s83, %s85
      %p89 = scmp.eq.s32.totalorder %s14, 0
      %p90 = por %p88, %p89
      %p91 = scmp.ne.s32.totalorder %s83, %s85
      %p92 = scmp.eq.s32.totalorder %s19, 1
      %p93 = por %p91, %p92
      %p94 = scmp.ne.s32.totalorder %s85, %s86
      %p95 = scmp.eq.s32.totalorder %s19, 0
      %p96 = por %p94, %p95
      %p97 = scmp.ne.s32.totalorder %s85, %s86
      %p98 = scmp.eq.s32.totalorder %s20, 1
      %p99 = por %p97, %p98
      %p101 = scmp.ne.s32.totalorder %s86, %s100
      %p102 = scmp.eq.s32.totalorder %s20, 0
      %p103 = por %p101, %p102
      %s105 = sadd.s32 %s104, 1
      %p108 = scmp.eq.s32.totalorder %s14, 1
      %p109 = scmp.ne.s32.totalorder %s104, %s106
      %p110 = scmp.eq.s32.totalorder %s14, 0
      %p111 = por %p109, %p110
      %p112 = scmp.ne.s32.totalorder %s104, %s106
      %p113 = scmp.eq.s32.totalorder %s19, 1
      %p114 = por %p112, %p113
      %p115 = scmp.ne.s32.totalorder %s106, %s107
      %p116 = scmp.eq.s32.totalorder %s19, 0
      %p117 = por %p115, %p116
      %p118 = scmp.ne.s32.totalorder %s106, %s107
      %p119 = scmp.eq.s32.totalorder %s20, 1
      %p120 = por %p118, %p119
      %p122 = scmp.ne.s32.totalorder %s107, %s121
      %p123 = scmp.eq.s32.totalorder %s20, 0
      %p124 = por %p122, %p123
      %s126 = sadd.s32 %s125, 1
      %p129 = scmp.eq.s32.totalorder %s14, 1
      %p130 = scmp.ne.s32.totalorder %s125, %s127
      %p131 = scmp.eq.s32.totalorder %s14, 0
      %p132 = por %p130, %p131
      %p133 = scmp.ne.s32.totalorder %s125, %s127
      %p134 = scmp.eq.s32.totalorder %s19, 1
      %p135 = por %p133, %p134
      %p136 = scmp.ne.s32.totalorder %s127, %s128
      %p137 = scmp.eq.s32.totalorder %s19, 0
      %p138 = por %p136, %p137
      %p139 = scmp.ne.s32.totalorder %s127, %s128
      %p140 = scmp.eq.s32.totalorder %s20, 1
      %p141 = por %p139, %p140
      %p143 = scmp.ne.s32.totalorder %s128, %s142
      %p144 = scmp.eq.s32.totalorder %s20, 0
      %p145 = por %p143, %p144
      %s146 = ssub.s32 %s21, %s33
      %s147 = ssub.s32 %s22, %s29
      %s148 = sor.u32 %s146, %s147
      %p149 = scmp.eq.s32.totalorder %s148, 0
      %s151 = sadd.s32 %s150, 1
      %s152 = scalar_select %p149, %s150, %s151
      %p155 = pneg %p149
      %p156 = scmp.eq.s32.totalorder %s14, 1
      %p157 = por %p155, %p156
      %p158 = scmp.ne.s32.totalorder %s150, %s153
      %p159 = scmp.eq.s32.totalorder %s14, 0
      %p160 = por %p158, %p159
      %p161 = scmp.ne.s32.totalorder %s150, %s153
      %p162 = scmp.eq.s32.totalorder %s19, 1
      %p163 = por %p161, %p162
      %p164 = scmp.ne.s32.totalorder %s153, %s154
      %p165 = scmp.eq.s32.totalorder %s19, 0
      %p166 = por %p164, %p165
      %p167 = scmp.ne.s32.totalorder %s153, %s154
      %p168 = scmp.eq.s32.totalorder %s20, 1
      %p169 = por %p167, %p168
      %p171 = scmp.ne.s32.totalorder %s154, %s170
      %p172 = scmp.eq.s32.totalorder %s20, 0
      %p173 = por %p171, %p172
      %p174 = scmp.le.s32.totalorder 1, %s14
      %p175 = scmp.lt.s32.totalorder %s14, 3
      %p176 = pnand %p174, %p175
      %p177 = pneg %p176
      // Predicated region
      $region9: #{tpu_custom_call.1} parent=5 // pred_check
        _
      $region10: #{tpu_custom_call.1} parent=5 // pred_check_branch
        %179 = sbr.rel (%p176) target = $region12
      $region11: #{tpu_custom_call.1} parent=5 // pred_region
        %s180 = ssub.s32 %s14, 1
        // Predicated region
        $region13: #{tpu_custom_call.1} parent=11 // pred_check
          %p181 = pneg %p75
        $region14: #{tpu_custom_call.1} parent=11 // pred_check_branch
          %183 = sbr.rel (%p181) target = $region16
        $region15: #{tpu_custom_call.1} parent=11 // pred_region
          _
        $region16: #{tpu_custom_call.1} parent=11 // pred_fallthru
          _
        // Predicated region
        $region17: #{tpu_custom_call.1} parent=11 // pred_check
          %p184 = pneg %p96
        $region18: #{tpu_custom_call.1} parent=11 // pred_check_branch
          %186 = sbr.rel (%p184) target = $region20
        $region19: #{tpu_custom_call.1} parent=11 // pred_region
          _
        $region20: #{tpu_custom_call.1} parent=11 // pred_fallthru
          _
        // Predicated region
        $region21: #{tpu_custom_call.1} parent=11 // pred_check
          %p187 = pneg %p117
        $region22: #{tpu_custom_call.1} parent=11 // pred_check_branch
          %189 = sbr.rel (%p187) target = $region24
        $region23: #{tpu_custom_call.1} parent=11 // pred_region
          _
        $region24: #{tpu_custom_call.1} parent=11 // pred_fallthru
          _
        // Predicated region
        $region25: #{tpu_custom_call.1} parent=11 // pred_check
          %p190 = pneg %p138
        $region26: #{tpu_custom_call.1} parent=11 // pred_check_branch
          %192 = sbr.rel (%p190) target = $region28
        $region27: #{tpu_custom_call.1} parent=11 // pred_region
          _
        $region28: #{tpu_custom_call.1} parent=11 // pred_fallthru
          _
      $region12: #{tpu_custom_call.1} parent=5 // pred_fallthru
        _
      %p193 = scmp.lt.s32.totalorder %s14, 2
      // Predicated region
      $region29: #{tpu_custom_call.1} parent=5 // pred_check
        %p194 = pneg %p193
      $region30: #{tpu_custom_call.1} parent=5 // pred_check_branch
        %196 = sbr.rel (%p194) target = $region32
      $region31: #{tpu_custom_call.1} parent=5 // pred_region
        // Predicated region
        $region33: #{tpu_custom_call.1} parent=31 // pred_check
          %p197 = pneg %p48
        $region34: #{tpu_custom_call.1} parent=31 // pred_check_branch
          %199 = sbr.rel (%p197) target = $region36
        $region35: #{tpu_custom_call.1} parent=31 // pred_region
          %s200 = smul.u32 2, %s22
          %p201 = scmp.lt.s32.totalorder %s21, 1
          %s202 = scalar_select %p201, %s21, 1
          %p203 = scmp.lt.s32.totalorder %s200, 1
          %s204 = scalar_select %p203, %s200, 1
          %s205 = smul.addr %s202, 2
          %s206 = sadd.s32 %s204, %s205
          %s207 = smul.addr %s206, 4
          %s208 = scalar_lea.vmem %s0, %s207
          %s209 = smul.u32 2, %s22
        $region36: #{tpu_custom_call.1} parent=31 // pred_fallthru
          _
      $region32: #{tpu_custom_call.1} parent=5 // pred_fallthru
        _
      %p210 = scmp.le.s32.totalorder 1, %s14
      %p211 = scmp.lt.s32.totalorder %s14, 3
      %p212 = pnand %p210, %p211
      %p213 = pneg %p212
      // Predicated region
      $region37: #{tpu_custom_call.1} parent=5 // pred_check
        _
      $region38: #{tpu_custom_call.1} parent=5 // pred_check_branch
        %215 = sbr.rel (%p212) target = $region40
      $region39: #{tpu_custom_call.1} parent=5 // pred_region
        %s216 = ssub.s32 %s14, 1
        %s217 = smul.u32 2, %s24
        %p218 = scmp.lt.s32.totalorder %s23, 1
        %s219 = scalar_select %p218, %s23, 1
        %p220 = scmp.lt.s32.totalorder %s217, 1
        %s221 = scalar_select %p220, %s217, 1
        %s222 = smul.addr %s219, 2
        %s223 = sadd.s32 %s221, %s222
        %s224 = smul.addr %s223, 4
        %s225 = scalar_lea.vmem %s0, %s224
        %p226 = pneg %p54
        %p227 = pneg %p51
        %p228 = pneg %p75
        %p229 = pneg %p72
        %p230 = pneg %p96
        %p231 = pneg %p93
        %p232 = pneg %p117
        %p233 = pneg %p114
        %p234 = pneg %p138
        %p235 = pneg %p135
        %p236 = pneg %p166
        %p237 = pneg %p163
        %s238 = sand.u32 %s153, 1
        %s239 = scalar_lea.sflag [#allocation3], %s238
        %s240 = sand.u32 %s153, 1
        %s241 = smul.addr %s240, 8
        %s242 = scalar_lea.vmem [#allocation2], %s241
        %s243 = smul.u32 2, %s24
        %p244 = scmp.lt.s32.totalorder %s23, 1
        %s245 = scalar_select %p244, %s23, 1
        %p246 = scmp.lt.s32.totalorder %s243, 1
        %s247 = scalar_select %p246, %s243, 1
        %s248 = smul.addr %s245, 2
        %s249 = sadd.s32 %s247, %s248
        %s250 = smul.addr %s249, 4
        %s251 = scalar_lea.vmem %s0, %s250
        %s252 = smul.u32 2, %s24
        %s253 = smul.u32 2, %s24
        %v254 = vld [vmem:[%s251] sm:$0xff]
        %v255 = vld [vmem:[%s1] sm:$0xff]
        %v256 = vld [vmem:[%s1 + $0x8] sm:$0xff]
        %v257 = vld [vmem:[%s2] sm:$0xff]
        %v258 = vld [vmem:[%s2 + $0x8] sm:$0xff]
        %260 = vset.pattern.permute.xlu0 0
        %261 = vperm.xlu0 %260, %v257
        %v262 = vpop.permute.xlu0 %261
        %265 = vset.pattern.permute.xlu0 0
        %266 = vperm.xlu0 %265, %v258
        %v267 = vpop.permute.xlu0 %266
        %v270 = vcombine.high %v254, %v254
        %vm271 = vcmask 31744
        %v273 = vsel %vm271, %v255, 0
        %v276 = vsel %vm271, %v256, 0
        %vm278 = vcmask 1043456
        %v279 = vsel %vm278, %v254, 0
        %v281 = vsel %vm278, %v270, 0
        %283 = vmatprep.subr.mxu0 %v281
        %284 = vmatpush1.msra.mxu0 %v279
        %285 = vmatprep.subr.mxu0 0.0
        %286 = vmatpush1.msra.mxu0 0.0
        %287 = vmatprep.subr.mxu0 0.0
        %288 = vmatpush1.msra.mxu0 0.0
        %289 = vmatprep.subr.mxu0 0.0
        %290 = vmatpush1.msra.mxu0 0.0
        %291 = vmatprep.subr.mxu0 0.0
        %292 = vmatpush1.msra.mxu0 0.0
        %293 = vmatprep.subr.mxu0 0.0
        %294 = vmatpush1.msra.mxu0 0.0
        %295 = vmatprep.subr.mxu0 0.0
        %296 = vmatpush1.msra.mxu0 0.0
        %297 = vmatprep.subr.mxu0 0.0
        %298 = vmatpush1.msra.mxu0 0.0
        %299 = vmatprep.subr.mxu0 0.0
        %300 = vmatpush1.msra.mxu0 0.0
        %301 = vmatprep.subr.mxu0 0.0
        %302 = vmatpush1.msra.mxu0 0.0
        %303 = vmatprep.subr.mxu0 0.0
        %304 = vmatpush1.msra.mxu0 0.0
        %305 = vmatprep.subr.mxu0 0.0
        %306 = vmatpush1.msra.mxu0 0.0
        %307 = vmatprep.subr.mxu0 0.0
        %308 = vmatpush1.msra.mxu0 0.0
        %309 = vmatprep.subr.mxu0 0.0
        %310 = vmatpush1.msra.mxu0 0.0
        %311 = vmatprep.subr.mxu0 0.0
        %312 = vmatpush1.msra.mxu0 0.0
        %313 = vmatprep.subr.mxu0 0.0
        %314 = vmatpush1.msra.mxu0 0.0
        %315 = vmatprep.subr.mxu0 0.0
        %316 = vmatpush1.msra.mxu0 0.0
        %317 = vmatprep.subr.mxu0 0.0
        %318 = vmatpush1.msra.mxu0 0.0
        %319 = vmatprep.subr.mxu0 0.0
        %320 = vmatpush1.msra.mxu0 0.0
        %321 = vmatprep.subr.mxu0 0.0
        %322 = vmatpush1.msra.mxu0 0.0
        %323 = vmatprep.subr.mxu0 0.0
        %324 = vmatpush1.msra.mxu0 0.0
        %325 = vmatprep.subr.mxu0 0.0
        %326 = vmatpush1.msra.mxu0 0.0
        %327 = vmatprep.subr.mxu0 0.0
        %328 = vmatpush1.msra.mxu0 0.0
        %329 = vmatprep.subr.mxu0 0.0
        %330 = vmatpush1.msra.mxu0 0.0
        %331 = vmatprep.subr.mxu0 0.0
        %332 = vmatpush1.msra.mxu0 0.0
        %333 = vmatprep.subr.mxu0 0.0
        %334 = vmatpush1.msra.mxu0 0.0
        %335 = vmatprep.subr.mxu0 0.0
        %336 = vmatpush1.msra.mxu0 0.0
        %337 = vmatprep.subr.mxu0 0.0
        %338 = vmatpush1.msra.mxu0 0.0
        %339 = vmatprep.subr.mxu0 0.0
        %340 = vmatpush1.msra.mxu0 0.0
        %341 = vmatprep.subr.mxu0 0.0
        %342 = vmatpush1.msra.mxu0 0.0
        %343 = vmatprep.subr.mxu0 0.0
        %344 = vmatpush1.msra.mxu0 0.0
        %345 = vmatprep.subr.mxu0 0.0
        %346 = vmatpush1.msra.mxu0 0.0
        %347 = vmatprep.mubr.f32.mxu0 0.0
        %348 = vmatmul.mubr.f32.gmra.mrb[0].mxu0 %v273
        %v349 = vpop.f32.mrb[0].mxu0
        %v350 = vadd.f32 %v262, %v349
        %v351 = vpop.f32.mrb[0].mxu0
        %v352 = vadd.f32 %v262, %v351
        %353 = vmatprep.mubr.f32.mxu0 0.0
        %354 = vmatmul.mubr.f32.gmra.mrb[0].mxu0 %v276
        %v355 = vpop.f32.mrb[0].mxu0
        %v356 = vadd.f32 %v267, %v355
        %v357 = vpop.f32.mrb[0].mxu0
        %v358 = vadd.f32 %v267, %v357
        %359 = vdwg.mxu0
        %v360 = vmax.f32 %v350, 0.0
        %v361 = vmax.f32 %v352, 0.0
        %v362 = vmax.f32 %v356, 0.0
        %v363 = vmax.f32 %v358, 0.0
        %v364 = vld [vmem:[%s3] sm:$0xf]
        %v365 = vld [vmem:[%s4] sm:$0xf]
        %367 = vset.pattern.permute.xlu0 0
        %368 = vperm.xlu0 %367, %v365
        %v369 = vpop.permute.xlu0 %368
        %vm371 = vcmask 130048
        %v373 = vsel %vm371, %v364, 0
        %375 = vmatprep.subr.mxu0 %v361
        %376 = vmatpush1.msra.mxu0 %v360
        %377 = vmatprep.subr.mxu0 %v363
        %378 = vmatpush1.msra.mxu0 %v362
        %379 = vmatprep.subr.mxu0 0.0
        %380 = vmatpush1.msra.mxu0 0.0
        %381 = vmatprep.subr.mxu0 0.0
        %382 = vmatpush1.msra.mxu0 0.0
        %383 = vmatprep.subr.mxu0 0.0
        %384 = vmatpush1.msra.mxu0 0.0
        %385 = vmatprep.subr.mxu0 0.0
        %386 = vmatpush1.msra.mxu0 0.0
        %387 = vmatprep.subr.mxu0 0.0
        %388 = vmatpush1.msra.mxu0 0.0
        %389 = vmatprep.subr.mxu0 0.0
        %390 = vmatpush1.msra.mxu0 0.0
        %391 = vmatprep.subr.mxu0 0.0
        %392 = vmatpush1.msra.mxu0 0.0
        %393 = vmatprep.subr.mxu0 0.0
        %394 = vmatpush1.msra.mxu0 0.0
        %395 = vmatprep.subr.mxu0 0.0
        %396 = vmatpush1.msra.mxu0 0.0
        %397 = vmatprep.subr.mxu0 0.0
        %398 = vmatpush1.msra.mxu0 0.0
        %399 = vmatprep.subr.mxu0 0.0
        %400 = vmatpush1.msra.mxu0 0.0
        %401 = vmatprep.subr.mxu0 0.0
        %402 = vmatpush1.msra.mxu0 0.0
        %403 = vmatprep.subr.mxu0 0.0
        %404 = vmatpush1.msra.mxu0 0.0
        %405 = vmatprep.subr.mxu0 0.0
        %406 = vmatpush1.msra.mxu0 0.0
        %407 = vmatprep.subr.mxu0 0.0
        %408 = vmatpush1.msra.mxu0 0.0
        %409 = vmatprep.subr.mxu0 0.0
        %410 = vmatpush1.msra.mxu0 0.0
        %411 = vmatprep.subr.mxu0 0.0
        %412 = vmatpush1.msra.mxu0 0.0
        %413 = vmatprep.subr.mxu0 0.0
        %414 = vmatpush1.msra.mxu0 0.0
        %415 = vmatprep.subr.mxu0 0.0
        %416 = vmatpush1.msra.mxu0 0.0
        %417 = vmatprep.subr.mxu0 0.0
        %418 = vmatpush1.msra.mxu0 0.0
        %419 = vmatprep.subr.mxu0 0.0
        %420 = vmatpush1.msra.mxu0 0.0
        %421 = vmatprep.subr.mxu0 0.0
        %422 = vmatpush1.msra.mxu0 0.0
        %423 = vmatprep.subr.mxu0 0.0
        %424 = vmatpush1.msra.mxu0 0.0
        %425 = vmatprep.subr.mxu0 0.0
        %426 = vmatpush1.msra.mxu0 0.0
        %427 = vmatprep.subr.mxu0 0.0
        %428 = vmatpush1.msra.mxu0 0.0
        %429 = vmatprep.subr.mxu0 0.0
        %430 = vmatpush1.msra.mxu0 0.0
        %431 = vmatprep.subr.mxu0 0.0
        %432 = vmatpush1.msra.mxu0 0.0
        %433 = vmatprep.subr.mxu0 0.0
        %434 = vmatpush1.msra.mxu0 0.0
        %435 = vmatprep.subr.mxu0 0.0
        %436 = vmatpush1.msra.mxu0 0.0
        %437 = vmatprep.subr.mxu0 0.0
        %438 = vmatpush1.msra.mxu0 0.0
        %439 = vmatprep.mubr.f32.mxu0 0.0
        %440 = vmatmul.mubr.f32.gmra.mrb[0].mxu0 %v373
        %v441 = vpop.f32.mrb[0].mxu0
        %v442 = vadd.f32 %v369, %v441
        %v443 = vpop.f32.mrb[0].mxu0
        %v444 = vadd.f32 %v369, %v443
        %445 = vdwg.mxu0
        %v448 = vcombine.low %v442, %v444
        %450 = vst [vmem:[%s242] sm:$0xff] %v448
        %s451 = sand.u32 %s153, 1
        %s452 = scalar_lea.sflag [#allocation3], %s451
        %s453 = sand.u32 %s153, 1
        %s454 = smul.addr %s453, 8
        %s455 = scalar_lea.vmem [#allocation2], %s454
        // Predicated region
        $region41: #{tpu_custom_call.1} parent=39 // pred_check
          %p456 = pneg %p163
        $region42: #{tpu_custom_call.1} parent=39 // pred_check_branch
          %458 = sbr.rel (%p456) target = $region44
        $region43: #{tpu_custom_call.1} parent=39 // pred_region
          %s459 = smul.u32 2, %s24
          %s461 = ssub.s32 128, 128
          %462 = vsyncadd %s452, %s461
          %s463 = smul.addr %s23, 2
          %s464 = sadd.s32 %s459, %s463
          %s465 = smul.addr %s464, 64
          %s466 = scalar_lea.hbm %s5, %s465
          %s468 = sshll.u32 %s455, 4
          %s469 = int_to_ptr.vmem [resolvable:$true] %s468
          %471 = dma.vmem_to_hbm [thread:$0]  %s469, 128, %s466, %s452
        $region44: #{tpu_custom_call.1} parent=39 // pred_fallthru
          _
      $region40: #{tpu_custom_call.1} parent=5 // pred_fallthru
        _
      %p472 = scmp.le.s32.totalorder 2, %s14
      // Predicated region
      $region45: #{tpu_custom_call.1} parent=5 // pred_check
        %p473 = pneg %p472
      $region46: #{tpu_custom_call.1} parent=5 // pred_check_branch
        %475 = sbr.rel (%p473) target = $region48
      $region47: #{tpu_custom_call.1} parent=5 // pred_region
        %s476 = ssub.s32 %s14, 2
        // Predicated region
        $region49: #{tpu_custom_call.1} parent=47 // pred_check
          %p477 = pneg %p169
        $region50: #{tpu_custom_call.1} parent=47 // pred_check_branch
          %479 = sbr.rel (%p477) target = $region52
        $region51: #{tpu_custom_call.1} parent=47 // pred_region
          %s480 = sand.u32 %s154, 1
          %s481 = scalar_lea.sflag [#allocation3], %s480
          %s482 = sand.u32 %s154, 1
          %s483 = smul.addr %s482, 8
          %s484 = scalar_lea.vmem [#allocation2], %s483
          %485 = dma.done %s481, 128
        $region52: #{tpu_custom_call.1} parent=47 // pred_fallthru
          _
      $region48: #{tpu_custom_call.1} parent=5 // pred_fallthru
        _
    $region6: #{tpu_custom_call.1} parent=1 // loop_footer
      %s18 = sadd.s32 1, %s14
    $region7: #{tpu_custom_call.1} parent=1 // loop_footer_branch
      %13 = sbr.rel target = $region3
    $region8: #{tpu_custom_call.1} parent=1 // loop_exit
      _
    %486 = vsyncpa [#allocation3], 1
    %s487 = scalar_lea.sflag [#allocation3], 1
    %488 = vsyncpa %s487, 1

</llo_original>
